<compile_context>
chip_gen: v7x
topology: tpu7x:2x2x1
jax: 0.10.0
libtpu: 0.0.40
codegen_flags: <defaults>
</compile_context>

<pallas_src>
import functools
import math

import jax
import jax.numpy as jnp
from jax.experimental import pallas as pl
from jax.experimental.pallas import tpu as pltpu


def _round_up(x, m):
    return (x + m - 1) // m * m


def _gelu_exact(x):
    # PyTorch nn.GELU() default: 0.5 * x * (1 + erf(x / sqrt(2)))
    return 0.5 * x * (1.0 + jax.lax.erf(x * (1.0 / math.sqrt(2.0))))


# --------------------------------------------------------------------------- kernels
def _ffn_kernel_resident(x_ref, w1_ref, b1_ref, w2_ref, b2_ref, o_ref):
    """Weights fully resident in VMEM; grid = (row tiles,)."""
    h = jnp.dot(x_ref[...], w1_ref[...], preferred_element_type=jnp.float32)
    h = _gelu_exact(h + b1_ref[...].astype(jnp.float32))
    y = jnp.dot(h.astype(w2_ref.dtype), w2_ref[...], preferred_element_type=jnp.float32)
    o_ref[...] = _gelu_exact(y + b2_ref[...].astype(jnp.float32)).astype(o_ref.dtype)


def _ffn_kernel_tiled(x_ref, w1_ref, b1_ref, w2_ref, b2_ref, o_ref, acc_ref):
    """Hidden dim tiled; grid = (row tiles [parallel], hidden tiles [arbitrary])."""
    t = pl.program_id(1)

    # First layer for this hidden chunk: h = gelu(x @ W1[:, t] + b1[t])  -> (TN, TH)
    h = jnp.dot(x_ref[...], w1_ref[...], preferred_element_type=jnp.float32)
    h = _gelu_exact(h + b1_ref[...].astype(jnp.float32))

    # Second-layer partial sum for this hidden chunk.
    partial = jnp.dot(h.astype(w2_ref.dtype), w2_ref[...],
                      preferred_element_type=jnp.float32)

    @pl.when(t == 0)
    def _first():
        acc_ref[...] = partial          # direct write: no zero-fill + RMW

    @pl.when(t > 0)
    def _accum():
        acc_ref[...] += partial

    @pl.when(t == pl.num_programs(1) - 1)
    def _finalize():
        y = _gelu_exact(acc_ref[...] + b2_ref[...].astype(jnp.float32))
        o_ref[...] = y.astype(o_ref.dtype)


# ----------------------------------------------------------------- VMEM bookkeeping
def _vmem_capacity_bytes():
    try:
        return int(pltpu.get_tpu_info().vmem_capacity_bytes)
    except Exception:
        pass
    try:
        kind = jax.devices()[0].device_kind.lower()
        if "v7" in kind:
            return 64 * 1024 * 1024
    except Exception:
        pass
    return 128 * 1024 * 1024


def _resident_vmem_bytes(tn, dim_p, hidden_p, x_item, w_item, out_item):
    return (2 * tn * dim_p * x_item            # x tile (double-buffered)
            + 2 * dim_p * hidden_p * w_item    # W1 (conservative 2x)
            + 2 * hidden_p * dim_p * w_item    # W2
            + 2 * (hidden_p + dim_p) * w_item  # biases
            + 2 * tn * dim_p * out_item        # out tile
            + tn * hidden_p * 4)               # f32 h intermediate


def _tiled_vmem_bytes(tn, th, dim_p, x_item, w_item, out_item):
    return (2 * tn * dim_p * x_item            # x tile
            + 2 * dim_p * th * w_item          # W1 hidden chunk
            + 2 * th * dim_p * w_item          # W2 hidden chunk
            + 2 * (th + dim_p) * w_item        # bias chunks
            + 2 * tn * dim_p * out_item        # out tile
            + tn * dim_p * 4                   # f32 accumulator scratch
            + tn * th * 4)                     # f32 h intermediate


# --------------------------------------------------------------------------- wrapper
@functools.partial(jax.jit, static_argnames=("row_tile", "hidden_tile", "force_tiled"))
def feed_forward(x, w1, b1, w2, b2, *, row_tile=None, hidden_tile=None,
                 force_tiled=False):
    """x: (batch, seq, dim); w1: (dim, hidden); b1: (hidden,); w2: (hidden, dim); b2: (dim,)."""
    batch, seq, dim = x.shape
    hidden = w1.shape[1]
    n = batch * seq

    x_item = jnp.dtype(x.dtype).itemsize
    w_item = jnp.dtype(w1.dtype).itemsize
    out_item = x_item

    # ---- generation-aware VMEM budget & tile defaults ----------------------------
    vmem_cap = min(_vmem_capacity_bytes(), 128 * 1024 * 1024)
    budget = max(vmem_cap - (8 << 20), 16 << 20)    # headroom for internal scratch

    if row_tile is None:
        row_tile = 1024 if vmem_cap >= (100 << 20) else 512
    if hidden_tile is None:
        hidden_tile = 512 if vmem_cap >= (100 << 20) else 256

    dim_p = _round_up(dim, 128)
    hidden_p128 = _round_up(hidden, 128)

    # Row tile: multiple of 8, no larger than the (padded) row count.
    tn = min(_round_up(row_tile, 8), _round_up(n, 8))

    # ---- weights-resident fast path check -----------------------------------------
    tn_res = None
    if not force_tiled:
        t = tn
        while True:
            if _resident_vmem_bytes(t, dim_p, hidden_p128,
                                    x_item, w_item, out_item) <= budget:
                tn_res = t
                break
            if t <= 256:
                break
            t = max(256, _round_up(t // 2, 8))

    if tn_res is not None:
        # ----------------------- resident path: weights loaded once -----------------
        tn = tn_res
        hidden_pad = hidden_p128
        n_p = _round_up(n, tn)

        grid = (n_p // tn,)
        kernel = _ffn_kernel_resident
        in_specs = [
            pl.BlockSpec((tn, dim_p), lambda i: (i, 0)),            # x row tile
            pl.BlockSpec((dim_p, hidden_pad), lambda i: (0, 0)),    # W1 (resident)
            pl.BlockSpec((1, hidden_pad), lambda i: (0, 0)),        # b1
            pl.BlockSpec((hidden_pad, dim_p), lambda i: (0, 0)),    # W2 (resident)
            pl.BlockSpec((1, dim_p), lambda i: (0, 0)),             # b2
        ]
        out_specs = pl.BlockSpec((tn, dim_p), lambda i: (i, 0))
        scratch_shapes = []
        dimension_semantics = ("parallel",)
        vmem_est = _resident_vmem_bytes(tn, dim_p, hidden_pad, x_item, w_item, out_item)
        weight_bytes = 2 * dim_p * hidden_pad * w_item              # streamed once
    else:
        # ----------------------- tiled path: hidden reduction -----------------------
        th = min(_round_up(hidden_tile, 128), hidden_p128)
        # Shrink th, then tn, until the working set fits the VMEM budget.
        while _tiled_vmem_bytes(tn, th, dim_p, x_item, w_item, out_item) > budget and th > 128:
            th = max(128, (th // 2) // 128 * 128)
        while _tiled_vmem_bytes(tn, th, dim_p, x_item, w_item, out_item) > budget and tn > 8:
            tn = max(8, _round_up(tn // 2, 8))

        # Pad hidden up to a multiple of th (no gcd collapse of the MXU tile).
        hidden_pad = _round_up(hidden, th)
        n_p = _round_up(n, tn)

        grid = (n_p // tn, hidden_pad // th)   # (parallel rows, hidden reduction)
        kernel = _ffn_kernel_tiled
        in_specs = [
            pl.BlockSpec((tn, dim_p), lambda i, t: (i, 0)),         # x row tile
            pl.BlockSpec((dim_p, th), lambda i, t: (0, t)),         # W1 hidden chunk
            pl.BlockSpec((1, th), lambda i, t: (0, t)),             # b1 hidden chunk
            pl.BlockSpec((th, dim_p), lambda i, t: (t, 0)),         # W2 hidden chunk
            pl.BlockSpec((1, dim_p), lambda i, t: (0, 0)),          # b2
        ]
        out_specs = pl.BlockSpec((tn, dim_p), lambda i, t: (i, 0))
        scratch_shapes = [pltpu.VMEM((tn, dim_p), jnp.float32)]
        dimension_semantics = ("parallel", "arbitrary")
        vmem_est = _tiled_vmem_bytes(tn, th, dim_p, x_item, w_item, out_item)
        # Weights are re-streamed once per row tile.
        weight_bytes = (n_p // tn) * 2 * dim_p * hidden_pad * w_item

    # ---- padding (zero padding is correctness-safe; skipped when already aligned) ---
    # TODO(synk): for repeated calls with unaligned weights, pre-pad W1/W2 once outside.
    x2 = x.reshape(n, dim)
    if (n_p, dim_p) != (n, dim):
        x2 = jnp.pad(x2, ((0, n_p - n), (0, dim_p - dim)))
    w1_p = w1 if (dim, hidden) == (dim_p, hidden_pad) else jnp.pad(
        w1, ((0, dim_p - dim), (0, hidden_pad - hidden)))
    w2_p = w2 if (hidden, dim) == (hidden_pad, dim_p) else jnp.pad(
        w2, ((0, hidden_pad - hidden), (0, dim_p - dim)))
    b1_p = (b1 if hidden == hidden_pad else jnp.pad(b1, (0, hidden_pad - hidden))
            ).reshape(1, hidden_pad)
    b2_p = (b2 if dim == dim_p else jnp.pad(b2, (0, dim_p - dim))).reshape(1, dim_p)

    # ---- VMEM limit (never above physical capacity) / cost hints --------------------
    vmem_limit = int(min(vmem_cap, max(vmem_est + (4 << 20), 32 << 20)))

    cost = pl.CostEstimate(
        flops=2 * n_p * dim_p * hidden_pad * 2,               # two matmuls
        transcendentals=n_p * (hidden_pad + dim_p),           # erf applications
        bytes_accessed=n_p * dim_p * (x_item + out_item) + weight_bytes,
    )

    out2 = pl.pallas_call(
        kernel,
        out_shape=jax.ShapeDtypeStruct((n_p, dim_p), x.dtype),
        grid_spec=pltpu.PrefetchScalarGridSpec(
            num_scalar_prefetch=0,
            grid=grid,
            in_specs=in_specs,
            out_specs=out_specs,
            scratch_shapes=scratch_shapes,
        ),
        compiler_params=pltpu.CompilerParams(
            dimension_semantics=dimension_semantics,
            vmem_limit_bytes=vmem_limit,
        ),
        cost_estimate=cost,
    )(x2, w1_p, b1_p, w2_p, b2_p)

    return out2[:n, :dim].reshape(batch, seq, dim)


def _reference(x, w1, b1, w2, b2):
    h = _gelu_exact(jnp.einsum("bsd,dh->bsh", x, w1) + b1)
    y = _gelu_exact(jnp.einsum("bsh,hd->bsd", h, w2) + b2)
    return y


if __name__ == "__main__":
    key = jax.random.PRNGKey(0)

    # ---- small toy shape (weights-resident fast path) ------------------------------
    batch, seq, dim, hidden = 2, 8, 32, 64
    kx, k1, kb1, k2, kb2, knext = jax.random.split(key, 6)
    x = jax.random.normal(kx, (batch, seq, dim), dtype=jnp.float32)
    lim1 = 1.0 / math.sqrt(dim)
    lim2 = 1.0 / math.sqrt(hidden)
    w1 = jax.random.uniform(k1, (dim, hidden), minval=-lim1, maxval=lim1, dtype=jnp.float32)
    b1 = jax.random.uniform(kb1, (hidden,), minval=-lim1, maxval=lim1, dtype=jnp.float32)
    w2 = jax.random.uniform(k2, (hidden, dim), minval=-lim2, maxval=lim2, dtype=jnp.float32)
    b2 = jax.random.uniform(kb2, (dim,), minval=-lim2, maxval=lim2, dtype=jnp.float32)

    out = feed_forward(x, w1, b1, w2, b2)
    jax.block_until_ready(out)
    ref = _reference(x, w1, b1, w2, b2)
    assert out.shape == (batch, seq, dim)
    assert jnp.allclose(out, ref, atol=1e-5, rtol=1e-5), "mismatch vs reference (toy / resident)"

    # ---- larger shape forcing the tiled (hidden-reduction) path --------------------
    # Exercises: row padding (n=272 -> 384), multi-tile row grid, hidden padded up to
    # a multiple of th (384 -> 512), 2-step hidden reduction with the f32 accumulator.
    batch2, seq2, dim2, hidden2 = 2, 136, 128, 384
    kx2, k12, kb12, k22, kb22 = jax.random.split(knext, 5)
    x_l = jax.random.normal(kx2, (batch2, seq2, dim2), dtype=jnp.float32)
    l1 = 1.0 / math.sqrt(dim2)
    l2 = 1.0 / math.sqrt(hidden2)
    w1_l = jax.random.uniform(k12, (dim2, hidden2), minval=-l1, maxval=l1, dtype=jnp.float32)
    b1_l = jax.random.uniform(kb12, (hidden2,), minval=-l1, maxval=l1, dtype=jnp.float32)
    w2_l = jax.random.uniform(k22, (hidden2, dim2), minval=-l2, maxval=l2, dtype=jnp.float32)
    b2_l = jax.random.uniform(kb22, (dim2,), minval=-l2, maxval=l2, dtype=jnp.float32)

    out_l = feed_forward(x_l, w1_l, b1_l, w2_l, b2_l,
                         row_tile=128, hidden_tile=256, force_tiled=True)
    jax.block_until_ready(out_l)
    ref_l = _reference(x_l, w1_l, b1_l, w2_l, b2_l)
    assert out_l.shape == (batch2, seq2, dim2)
    assert jnp.allclose(out_l, ref_l, atol=1e-3, rtol=1e-3), "mismatch vs reference (tiled)"

    print("KERNEL_OK")
</pallas_src>

<mosaic_0001>
module attributes {stable_mosaic.version = 11 : i64} {
  func.func @_ffn_kernel_resident(%arg0: i32, %arg1: memref<16x128xf32, #tpu.memory_space<vmem>>, %arg2: memref<128x128xf32, #tpu.memory_space<vmem>>, %arg3: memref<1x128xf32, #tpu.memory_space<vmem>>, %arg4: memref<128x128xf32, #tpu.memory_space<vmem>>, %arg5: memref<1x128xf32, #tpu.memory_space<vmem>>, %arg6: memref<16x128xf32, #tpu.memory_space<vmem>>) attributes {dimension_semantics = [#tpu.dimension_semantics<parallel>], iteration_bounds = array<i64: 1>, scalar_prefetch = 0 : i64, scratch_operands = 0 : i64, tpu.core_type = #tpu.core_type<tc>, window_params = [{transform_indices = @transform_0, window_bounds = array<i64: 16, 128>}, {pipeline_mode = #tpu.pipeline_mode<synchronous>, transform_indices = @transform_1, window_bounds = array<i64: 128, 128>}, {pipeline_mode = #tpu.pipeline_mode<synchronous>, transform_indices = @transform_2, window_bounds = array<i64: 1, 128>}, {pipeline_mode = #tpu.pipeline_mode<synchronous>, transform_indices = @transform_3, window_bounds = array<i64: 128, 128>}, {pipeline_mode = #tpu.pipeline_mode<synchronous>, transform_indices = @transform_4, window_bounds = array<i64: 1, 128>}, {transform_indices = @transform_5, window_bounds = array<i64: 16, 128>}]} {
    %c0 = arith.constant 0 : index
    %c0_0 = arith.constant 0 : index
    %0 = vector.load %arg1[%c0, %c0_0] : memref<16x128xf32, #tpu.memory_space<vmem>>, vector<16x128xf32>
    %c0_1 = arith.constant 0 : index
    %c0_2 = arith.constant 0 : index
    %1 = vector.load %arg2[%c0_1, %c0_2] : memref<128x128xf32, #tpu.memory_space<vmem>>, vector<128x128xf32>
    %cst = arith.constant dense<0.000000e+00> : vector<16x128xf32>
    %2 = tpu.matmul %0, %1, %cst {dimension_numbers = #tpu.dot_dimension_numbers<[1], [0], [0], [1], [0, 0, 1, 1], [], []>} : vector<16x128xf32>, vector<128x128xf32>, vector<16x128xf32> -> vector<16x128xf32>
    %c0_3 = arith.constant 0 : index
    %c0_4 = arith.constant 0 : index
    %3 = vector.load %arg3[%c0_3, %c0_4] : memref<1x128xf32, #tpu.memory_space<vmem>>, vector<1x128xf32>
    %4 = vector.broadcast %3 : vector<1x128xf32> to vector<16x128xf32>
    %5 = arith.addf %2, %4 : vector<16x128xf32>
    %cst_5 = arith.constant 5.000000e-01 : f32
    %6 = vector.broadcast %cst_5 : f32 to vector<16x128xf32>
    %7 = arith.mulf %6, %5 : vector<16x128xf32>
    %cst_6 = arith.constant 0.707106769 : f32
    %8 = vector.broadcast %cst_6 : f32 to vector<16x128xf32>
    %9 = arith.mulf %5, %8 : vector<16x128xf32>
    %10 = math.erf %9 : vector<16x128xf32>
    %cst_7 = arith.constant 1.000000e+00 : f32
    %11 = vector.broadcast %cst_7 : f32 to vector<16x128xf32>
    %12 = arith.addf %11, %10 : vector<16x128xf32>
    %13 = arith.mulf %7, %12 : vector<16x128xf32>
    %c0_8 = arith.constant 0 : index
    %c0_9 = arith.constant 0 : index
    %14 = vector.load %arg4[%c0_8, %c0_9] : memref<128x128xf32, #tpu.memory_space<vmem>>, vector<128x128xf32>
    %cst_10 = arith.constant dense<0.000000e+00> : vector<16x128xf32>
    %15 = tpu.matmul %13, %14, %cst_10 {dimension_numbers = #tpu.dot_dimension_numbers<[1], [0], [0], [1], [0, 0, 1, 1], [], []>} : vector<16x128xf32>, vector<128x128xf32>, vector<16x128xf32> -> vector<16x128xf32>
    %c0_11 = arith.constant 0 : index
    %c0_12 = arith.constant 0 : index
    %16 = vector.load %arg5[%c0_11, %c0_12] : memref<1x128xf32, #tpu.memory_space<vmem>>, vector<1x128xf32>
    %17 = vector.broadcast %16 : vector<1x128xf32> to vector<16x128xf32>
    %18 = arith.addf %15, %17 : vector<16x128xf32>
    %cst_13 = arith.constant 5.000000e-01 : f32
    %19 = vector.broadcast %cst_13 : f32 to vector<16x128xf32>
    %20 = arith.mulf %19, %18 : vector<16x128xf32>
    %cst_14 = arith.constant 0.707106769 : f32
    %21 = vector.broadcast %cst_14 : f32 to vector<16x128xf32>
    %22 = arith.mulf %18, %21 : vector<16x128xf32>
    %23 = math.erf %22 : vector<16x128xf32>
    %cst_15 = arith.constant 1.000000e+00 : f32
    %24 = vector.broadcast %cst_15 : f32 to vector<16x128xf32>
    %25 = arith.addf %24, %23 : vector<16x128xf32>
    %26 = arith.mulf %20, %25 : vector<16x128xf32>
    %c0_16 = arith.constant 0 : index
    %c0_17 = arith.constant 0 : index
    %27 = vector.load %arg6[%c0_16, %c0_17] : memref<16x128xf32, #tpu.memory_space<vmem>>, vector<16x128xf32>
    tpu.vector_store %arg6[%c0_16, %c0_17], %26 {strides = array<i32>} : memref<16x128xf32, #tpu.memory_space<vmem>>, vector<16x128xf32>,
    return
  }
  func.func @transform_0(%arg0: i32) -> (i32, i32) {
    %c0_i32 = arith.constant 0 : i32
    %c0_i32_0 = arith.constant 0 : i32
    return %arg0, %c0_i32 : i32, i32
  }
  func.func @transform_1(%arg0: i32) -> (i32, i32) {
    %c0_i32 = arith.constant 0 : i32
    %c0_i32_0 = arith.constant 0 : i32
    %c0_i32_1 = arith.constant 0 : i32
    return %c0_i32, %c0_i32_0 : i32, i32
  }
  func.func @transform_2(%arg0: i32) -> (i32, i32) {
    %c0_i32 = arith.constant 0 : i32
    %c0_i32_0 = arith.constant 0 : i32
    %c0_i32_1 = arith.constant 0 : i32
    return %c0_i32, %c0_i32_0 : i32, i32
  }
  func.func @transform_3(%arg0: i32) -> (i32, i32) {
    %c0_i32 = arith.constant 0 : i32
    %c0_i32_0 = arith.constant 0 : i32
    %c0_i32_1 = arith.constant 0 : i32
    return %c0_i32, %c0_i32_0 : i32, i32
  }
  func.func @transform_4(%arg0: i32) -> (i32, i32) {
    %c0_i32 = arith.constant 0 : i32
    %c0_i32_0 = arith.constant 0 : i32
    %c0_i32_1 = arith.constant 0 : i32
    return %c0_i32, %c0_i32_0 : i32, i32
  }
  func.func @transform_5(%arg0: i32) -> (i32, i32) {
    %c0_i32 = arith.constant 0 : i32
    %c0_i32_0 = arith.constant 0 : i32
    return %arg0, %c0_i32 : i32, i32
  }
}

</mosaic_0001>

<llo_original>
// kernel: feed_forward.1
$region0: #{feed_forward.1}
  #allocation0 [shape = 'u32[]', space=smem, size = 0x4, offset = 0x4, fixed_abs, tag = 'smem constant byte address 0x4 - core index']
  #allocation1 [shape = 'u32[144,128]{1,0:T(1,128)}', space=vmem, size = 0x12000, scoped, tag = 'internal scratch']
  %s0 = inlined_call_operand.vmem [shape: f32[16,128], index: 0, kind: input, shape index: {}]
  %s1 = inlined_call_operand.vmem [shape: f32[128,128], index: 1, kind: input, shape index: {}]
  %s2 = inlined_call_operand.vmem [shape: f32[1,128], index: 2, kind: input, shape index: {}]
  %s3 = inlined_call_operand.vmem [shape: f32[128,128], index: 3, kind: input, shape index: {}]
  %s4 = inlined_call_operand.vmem [shape: f32[1,128], index: 4, kind: input, shape index: {}]
  %s5 = inlined_call_operand.vmem [shape: f32[16,128], index: 5, kind: output, shape index: {}]
  %s6 = sld [smem:[#allocation0]]
  $region30: #{feed_forward.1} parent=0
    _
  %s8 = ssub.s32 1, %s6
  %s9 = scalar_select 0, %s8, %s6
  // Predicated region
  $region2: #{feed_forward.1} parent=0 // pred_check
    _
  $region3: #{feed_forward.1} parent=0 // pred_check_branch
    %11 = sbr.rel (0) target = $region5
  $region4: #{feed_forward.1} parent=0 // pred_region
    _
  $region5: #{feed_forward.1} parent=0 // pred_fallthru
    _
  // Predicated region
  $region6: #{feed_forward.1} parent=0 // pred_check
    _
  $region7: #{feed_forward.1} parent=0 // pred_check_branch
    %13 = sbr.rel (0) target = $region9
  $region8: #{feed_forward.1} parent=0 // pred_region
    _
  $region9: #{feed_forward.1} parent=0 // pred_fallthru
    _
  // Predicated region
  $region10: #{feed_forward.1} parent=0 // pred_check
    _
  $region11: #{feed_forward.1} parent=0 // pred_check_branch
    %15 = sbr.rel (0) target = $region13
  $region12: #{feed_forward.1} parent=0 // pred_region
    _
  $region13: #{feed_forward.1} parent=0 // pred_fallthru
    _
  // Predicated region
  $region14: #{feed_forward.1} parent=0 // pred_check
    _
  $region15: #{feed_forward.1} parent=0 // pred_check_branch
    %17 = sbr.rel (0) target = $region17
  $region16: #{feed_forward.1} parent=0 // pred_region
    _
  $region17: #{feed_forward.1} parent=0 // pred_fallthru
    _
  // Predicated region
  $region18: #{feed_forward.1} parent=0 // pred_check
    _
  $region19: #{feed_forward.1} parent=0 // pred_check_branch
    %19 = sbr.rel (0) target = $region21
  $region20: #{feed_forward.1} parent=0 // pred_region
    _
  $region21: #{feed_forward.1} parent=0 // pred_fallthru
    _
  %v20 = vld [vmem:[%s0] sm:$0xff]
  %v21 = vld [vmem:[%s0 + $0x8] sm:$0xff]
  %v22 = vld [vmem:[%s1] sm:$0xff]
  %v23 = vld [vmem:[%s1 + $0x8] sm:$0xff]
  %v24 = vld [vmem:[%s1 + $0x10] sm:$0xff]
  %v25 = vld [vmem:[%s1 + $0x18] sm:$0xff]
  %v26 = vld [vmem:[%s1 + $0x20] sm:$0xff]
  %v27 = vld [vmem:[%s1 + $0x28] sm:$0xff]
  %v28 = vld [vmem:[%s1 + $0x30] sm:$0xff]
  %v29 = vld [vmem:[%s1 + $0x38] sm:$0xff]
  %v30 = vld [vmem:[%s1 + $0x40] sm:$0xff]
  %v31 = vld [vmem:[%s1 + $0x48] sm:$0xff]
  %v32 = vld [vmem:[%s1 + $0x50] sm:$0xff]
  %v33 = vld [vmem:[%s1 + $0x58] sm:$0xff]
  %v34 = vld [vmem:[%s1 + $0x60] sm:$0xff]
  %v35 = vld [vmem:[%s1 + $0x68] sm:$0xff]
  %v36 = vld [vmem:[%s1 + $0x70] sm:$0xff]
  %v37 = vld [vmem:[%s1 + $0x78] sm:$0xff]
  %v38 = vld [vmem:[%s2] sm:$0x1]
  %v40 = vlaneseq
  %v41 = vshrl.u32 %v40, 7
  %v42 = vsub.s32 0, %v41
  %v43 = vrot.slane %v38, %v42
  %45 = vmatprep.subr.mxu0 0.0
  %46 = vmatpush1.msra.mxu0 %v22
  %47 = vmatprep.subr.mxu0 0.0
  %48 = vmatpush1.msra.mxu0 %v23
  %49 = vmatprep.subr.mxu0 0.0
  %50 = vmatpush1.msra.mxu0 %v24
  %51 = vmatprep.subr.mxu0 0.0
  %52 = vmatpush1.msra.mxu0 %v25
  %53 = vmatprep.subr.mxu0 0.0
  %54 = vmatpush1.msra.mxu0 %v26
  %55 = vmatprep.subr.mxu0 0.0
  %56 = vmatpush1.msra.mxu0 %v27
  %57 = vmatprep.subr.mxu0 0.0
  %58 = vmatpush1.msra.mxu0 %v28
  %59 = vmatprep.subr.mxu0 0.0
  %60 = vmatpush1.msra.mxu0 %v29
  %61 = vmatprep.subr.mxu0 0.0
  %62 = vmatpush1.msra.mxu0 %v30
  %63 = vmatprep.subr.mxu0 0.0
  %64 = vmatpush1.msra.mxu0 %v31
  %65 = vmatprep.subr.mxu0 0.0
  %66 = vmatpush1.msra.mxu0 %v32
  %67 = vmatprep.subr.mxu0 0.0
  %68 = vmatpush1.msra.mxu0 %v33
  %69 = vmatprep.subr.mxu0 0.0
  %70 = vmatpush1.msra.mxu0 %v34
  %71 = vmatprep.subr.mxu0 0.0
  %72 = vmatpush1.msra.mxu0 %v35
  %73 = vmatprep.subr.mxu0 0.0
  %74 = vmatpush1.msra.mxu0 %v36
  %75 = vmatprep.subr.mxu0 0.0
  %76 = vmatpush1.msra.mxu0 %v37
  %77 = vmatprep.subr.mxu0 0.0
  %78 = vmatpush1.msra.mxu0 0.0
  %79 = vmatprep.subr.mxu0 0.0
  %80 = vmatpush1.msra.mxu0 0.0
  %81 = vmatprep.subr.mxu0 0.0
  %82 = vmatpush1.msra.mxu0 0.0
  %83 = vmatprep.subr.mxu0 0.0
  %84 = vmatpush1.msra.mxu0 0.0
  %85 = vmatprep.subr.mxu0 0.0
  %86 = vmatpush1.msra.mxu0 0.0
  %87 = vmatprep.subr.mxu0 0.0
  %88 = vmatpush1.msra.mxu0 0.0
  %89 = vmatprep.subr.mxu0 0.0
  %90 = vmatpush1.msra.mxu0 0.0
  %91 = vmatprep.subr.mxu0 0.0
  %92 = vmatpush1.msra.mxu0 0.0
  %93 = vmatprep.subr.mxu0 0.0
  %94 = vmatpush1.msra.mxu0 0.0
  %95 = vmatprep.subr.mxu0 0.0
  %96 = vmatpush1.msra.mxu0 0.0
  %97 = vmatprep.subr.mxu0 0.0
  %98 = vmatpush1.msra.mxu0 0.0
  %99 = vmatprep.subr.mxu0 0.0
  %100 = vmatpush1.msra.mxu0 0.0
  %101 = vmatprep.subr.mxu0 0.0
  %102 = vmatpush1.msra.mxu0 0.0
  %103 = vmatprep.subr.mxu0 0.0
  %104 = vmatpush1.msra.mxu0 0.0
  %105 = vmatprep.subr.mxu0 0.0
  %106 = vmatpush1.msra.mxu0 0.0
  %107 = vmatprep.subr.mxu0 0.0
  %108 = vmatpush1.msra.mxu0 0.0
  %109 = vmatprep.mubr.f32.mxu0 0.0
  %110 = vmatmul.mubr.f32.gmra.mrb[0].mxu0 %v20
  %v111 = vpop.f32.mrb[0].mxu0
  %v112 = vadd.f32 %v43, %v111
  %v113 = vpop.f32.mrb[0].mxu0
  %114 = vmatprep.mubr.f32.mxu0 0.0
  %115 = vmatmul.mubr.f32.gmra.mrb[0].mxu0 %v21
  %v116 = vpop.f32.mrb[0].mxu0
  %v117 = vadd.f32 %v43, %v116
  %v118 = vpop.f32.mrb[0].mxu0
  %119 = vdwg.mxu0
  %v120 = vmul.f32 %v112, 0.5
  %v121 = vmul.f32 %v117, 0.5
  %v122 = vmul.f32 %v112, 0.70710677
  %v123 = vmul.f32 %v117, 0.70710677
  %v124 = verf.f32.pop %v122
  %v125 = verf.f32.pop %v123
  %v126 = vadd.f32 %v124, 1.0
  %v127 = vadd.f32 %v125, 1.0
  %v128 = vmul.f32 %v120, %v126
  %v129 = vmul.f32 %v121, %v127
  %v130 = vld [vmem:[%s3] sm:$0xff]
  %v131 = vld [vmem:[%s3 + $0x8] sm:$0xff]
  %v132 = vld [vmem:[%s3 + $0x10] sm:$0xff]
  %v133 = vld [vmem:[%s3 + $0x18] sm:$0xff]
  %v134 = vld [vmem:[%s3 + $0x20] sm:$0xff]
  %v135 = vld [vmem:[%s3 + $0x28] sm:$0xff]
  %v136 = vld [vmem:[%s3 + $0x30] sm:$0xff]
  %v137 = vld [vmem:[%s3 + $0x38] sm:$0xff]
  %v138 = vld [vmem:[%s3 + $0x40] sm:$0xff]
  %v139 = vld [vmem:[%s3 + $0x48] sm:$0xff]
  %v140 = vld [vmem:[%s3 + $0x50] sm:$0xff]
  %v141 = vld [vmem:[%s3 + $0x58] sm:$0xff]
  %v142 = vld [vmem:[%s3 + $0x60] sm:$0xff]
  %v143 = vld [vmem:[%s3 + $0x68] sm:$0xff]
  %v144 = vld [vmem:[%s3 + $0x70] sm:$0xff]
  %v145 = vld [vmem:[%s3 + $0x78] sm:$0xff]
  %v146 = vld [vmem:[%s4] sm:$0x1]
  %v148 = vlaneseq
  %v149 = vshrl.u32 %v148, 7
  %v150 = vsub.s32 0, %v149
  %v151 = vrot.slane %v146, %v150
  %153 = vmatprep.subr.mxu0 0.0
  %154 = vmatpush1.msra.mxu0 %v130
  %155 = vmatprep.subr.mxu0 0.0
  %156 = vmatpush1.msra.mxu0 %v131
  %157 = vmatprep.subr.mxu0 0.0
  %158 = vmatpush1.msra.mxu0 %v132
  %159 = vmatprep.subr.mxu0 0.0
  %160 = vmatpush1.msra.mxu0 %v133
  %161 = vmatprep.subr.mxu0 0.0
  %162 = vmatpush1.msra.mxu0 %v134
  %163 = vmatprep.subr.mxu0 0.0
  %164 = vmatpush1.msra.mxu0 %v135
  %165 = vmatprep.subr.mxu0 0.0
  %166 = vmatpush1.msra.mxu0 %v136
  %167 = vmatprep.subr.mxu0 0.0
  %168 = vmatpush1.msra.mxu0 %v137
  %169 = vmatprep.subr.mxu0 0.0
  %170 = vmatpush1.msra.mxu0 %v138
  %171 = vmatprep.subr.mxu0 0.0
  %172 = vmatpush1.msra.mxu0 %v139
  %173 = vmatprep.subr.mxu0 0.0
  %174 = vmatpush1.msra.mxu0 %v140
  %175 = vmatprep.subr.mxu0 0.0
  %176 = vmatpush1.msra.mxu0 %v141
  %177 = vmatprep.subr.mxu0 0.0
  %178 = vmatpush1.msra.mxu0 %v142
  %179 = vmatprep.subr.mxu0 0.0
  %180 = vmatpush1.msra.mxu0 %v143
  %181 = vmatprep.subr.mxu0 0.0
  %182 = vmatpush1.msra.mxu0 %v144
  %183 = vmatprep.subr.mxu0 0.0
  %184 = vmatpush1.msra.mxu0 %v145
  %185 = vmatprep.subr.mxu0 0.0
  %186 = vmatpush1.msra.mxu0 0.0
  %187 = vmatprep.subr.mxu0 0.0
  %188 = vmatpush1.msra.mxu0 0.0
  %189 = vmatprep.subr.mxu0 0.0
  %190 = vmatpush1.msra.mxu0 0.0
  %191 = vmatprep.subr.mxu0 0.0
  %192 = vmatpush1.msra.mxu0 0.0
  %193 = vmatprep.subr.mxu0 0.0
  %194 = vmatpush1.msra.mxu0 0.0
  %195 = vmatprep.subr.mxu0 0.0
  %196 = vmatpush1.msra.mxu0 0.0
  %197 = vmatprep.subr.mxu0 0.0
  %198 = vmatpush1.msra.mxu0 0.0
  %199 = vmatprep.subr.mxu0 0.0
  %200 = vmatpush1.msra.mxu0 0.0
  %201 = vmatprep.subr.mxu0 0.0
  %202 = vmatpush1.msra.mxu0 0.0
  %203 = vmatprep.subr.mxu0 0.0
  %204 = vmatpush1.msra.mxu0 0.0
  %205 = vmatprep.subr.mxu0 0.0
  %206 = vmatpush1.msra.mxu0 0.0
  %207 = vmatprep.subr.mxu0 0.0
  %208 = vmatpush1.msra.mxu0 0.0
  %209 = vmatprep.subr.mxu0 0.0
  %210 = vmatpush1.msra.mxu0 0.0
  %211 = vmatprep.subr.mxu0 0.0
  %212 = vmatpush1.msra.mxu0 0.0
  %213 = vmatprep.subr.mxu0 0.0
  %214 = vmatpush1.msra.mxu0 0.0
  %215 = vmatprep.subr.mxu0 0.0
  %216 = vmatpush1.msra.mxu0 0.0
  %217 = vmatprep.mubr.f32.mxu0 0.0
  %218 = vmatmul.mubr.f32.gmra.mrb[0].mxu0 %v128
  %v219 = vpop.f32.mrb[0].mxu0
  %v220 = vadd.f32 %v151, %v219
  %v221 = vpop.f32.mrb[0].mxu0
  %222 = vmatprep.mubr.f32.mxu0 0.0
  %223 = vmatmul.mubr.f32.gmra.mrb[0].mxu0 %v129
  %v224 = vpop.f32.mrb[0].mxu0
  %v225 = vadd.f32 %v151, %v224
  %v226 = vpop.f32.mrb[0].mxu0
  %227 = vdwg.mxu0
  %v228 = vmul.f32 %v220, 0.5
  %v229 = vmul.f32 %v225, 0.5
  %v230 = vmul.f32 %v220, 0.70710677
  %v231 = vmul.f32 %v225, 0.70710677
  %v232 = verf.f32.pop %v230
  %v233 = verf.f32.pop %v231
  %v234 = vadd.f32 %v232, 1.0
  %v235 = vadd.f32 %v233, 1.0
  %v236 = vmul.f32 %v228, %v234
  %v237 = vmul.f32 %v229, %v235
  %238 = vst [vmem:[%s5] sm:$0xff] %v236
  %239 = vst [vmem:[%s5 + $0x8] sm:$0xff] %v237
  // Predicated region
  $region22: #{feed_forward.1} parent=0 // pred_check
    _
  $region23: #{feed_forward.1} parent=0 // pred_check_branch
    %241 = sbr.rel (0) target = $region25
  $region24: #{feed_forward.1} parent=0 // pred_region
    _
  $region25: #{feed_forward.1} parent=0 // pred_fallthru
    _
  // Predicated region
  $region26: #{feed_forward.1} parent=0 // pred_check
    _
  $region27: #{feed_forward.1} parent=0 // pred_check_branch
    %243 = sbr.rel (0) target = $region29
  $region28: #{feed_forward.1} parent=0 // pred_region
    _
  $region29: #{feed_forward.1} parent=0 // pred_fallthru
    _

</llo_original>
